<compile_context>
chip_gen: v6e
topology: v6e:2x2x1
jax: 0.10.0
libtpu: 0.0.40
codegen_flags: <defaults>
</compile_context>

<pallas_src>
import functools

import jax
import jax.numpy as jnp
from jax import lax
from jax.experimental import pallas as pl
from jax.experimental.pallas import tpu as pltpu


# ------------------------- generation-aware sizing helpers -------------------------

def _device_kind():
    try:
        return jax.devices()[0].device_kind.lower()
    except Exception:
        return ""


def _num_tensorcores(kind):
    # v7x exposes 2 TensorCores per chip via a "parallel" leading grid axis; v5e/v6e
    # (and anything unknown) are treated as a single core so we don't pay for a dead
    # serial core axis / duplicate clamped tile on 1-TC generations.
    return 2 if "v7" in kind else 1


def _vmem_plan(kind):
    """Returns (tile byte budget, vmem_limit_bytes or None) per generation."""
    mib = 1024 * 1024
    if "v7" in kind:                      # 64 MiB physical / TC: leave real headroom
        return 20 * mib, 48 * mib
    if "v6" in kind or "v5" in kind:      # 128 MiB physical; scoped default is the tight one
        return 48 * mib, 96 * mib
    return 12 * mib, None                 # unknown backend / interpreter: stay conservative


def _choose_tm(n_rows, n_cols, dtype_bytes, *, budget_bytes, resident_bytes=0, max_tm=4096):
    """Largest row tile whose double-buffered native-dtype DMA block plus ~3 f32-equivalent
    in-kernel intermediates (f32 cast, exp(x - m), iota/select) fits the per-gen budget."""
    per_row = n_cols * (2 * dtype_bytes + 3 * 4)
    avail = max(budget_bytes - resident_bytes, 16 * per_row)
    tm = min(max_tm, avail // per_row)
    tm = max(16, (tm // 16) * 16)         # multiple of 16: valid sublane tiling for f32/bf16
    if tm >= n_rows:
        return n_rows                     # single full-extent block (exempt from (8,128) rule)
    return tm


# --------------------------------- kernel body --------------------------------------

def _ls_rows(x_f32, targets_i32, smoothing):
    """Per-row label-smoothing CE, shape [rows, 1].

    Algebraic form that never materializes logp or the weight matrix:
      per_row = (1-s) * (lse - x_t) + (s/C) * (C*lse - sum_x),  lse = m + log(sum exp(x-m))
    """
    rows, nc = x_f32.shape
    m = jnp.max(x_f32, axis=-1, keepdims=True)                       # [rows, 1]
    z = jnp.sum(jnp.exp(x_f32 - m), axis=-1, keepdims=True)          # [rows, 1]
    lse = m + jnp.log(z)                                             # [rows, 1]
    sum_x = jnp.sum(x_f32, axis=-1, keepdims=True)                   # [rows, 1]
    col = lax.broadcasted_iota(jnp.int32, (rows, nc), 1)
    x_t = jnp.sum(jnp.where(col == targets_i32, x_f32, 0.0),
                  axis=-1, keepdims=True)                            # [rows, 1]
    return (1.0 - smoothing) * (lse - x_t) + (smoothing / nc) * (nc * lse - sum_x)


def _fused_ls_ce_kernel(cls_x_ref, cls_t_ref, px_ref, pt_ref, out_ref, acc_ref, *,
                        n_patch_rows, n_cls_rows, n_tiles, tiles_per_core,
                        smoothing, aux_r):
    core = pl.program_id(0)
    step = pl.program_id(1)
    tile_idx = core * tiles_per_core + step

    @pl.when(step == 0)
    def _init():
        acc_ref[...] = jnp.zeros_like(acc_ref)

    # ---- class head: computed exactly once (core 0, first step); block is the full array ----
    @pl.when((core == 0) & (step == 0))
    def _class_head():
        x = cls_x_ref[...].astype(jnp.float32)                       # [Bc, C]
        per_row = _ls_rows(x, cls_t_ref[...], smoothing)             # [Bc, 1]
        acc_ref[...] += jnp.sum(per_row) * (1.0 / n_cls_rows)        # mean over class rows

    # ---- patch-head tile; skip the clamped duplicate tile entirely (odd n_tiles, 2 cores) --
    @pl.when(tile_idx < n_tiles)
    def _patch_tile():
        x = px_ref[...].astype(jnp.float32)                          # [tm, C] native-dtype DMA
        tm = x.shape[0]
        per_row = _ls_rows(x, pt_ref[...], smoothing)                # [tm, 1]
        # Rows past n_patch_rows (partial last tile) hold unspecified data; the select
        # below (a true select, NOT a multiply) keeps any NaN/Inf they produce out of the sum.
        row = tile_idx * tm + lax.broadcasted_iota(jnp.int32, (tm, 1), 0)
        per_row = jnp.where(row < n_patch_rows, per_row, 0.0)
        acc_ref[...] += jnp.sum(per_row) * (aux_r / n_patch_rows)    # aux_r * mean over rows

    @pl.when(step == tiles_per_core - 1)
    def _finalize():
        out_ref[...] = acc_ref[...]


# --------------------------------- host wrapper --------------------------------------

def _fused_label_smoothing_loss(cls_x, cls_t, px, pt, *, smoothing, aux_r):
    n_cls, c = cls_x.shape
    n_patch, c2 = px.shape
    assert c == c2, "class head and patch head must share num_classes"

    kind = _device_kind()
    num_cores = _num_tensorcores(kind)
    budget, vmem_limit = _vmem_plan(kind)

    p_bytes = px.dtype.itemsize
    c_bytes = cls_x.dtype.itemsize
    # class-head resident block (double-buffered by default) + its f32 intermediates
    resident = n_cls * c * (2 * c_bytes + 3 * 4)
    tm = _choose_tm(n_patch, c, p_bytes, budget_bytes=budget, resident_bytes=resident)

    n_tiles = pl.cdiv(n_patch, tm)
    tiles_per_core = pl.cdiv(n_tiles, num_cores)

    def patch_block(co, i):
        # clamp so we never issue a fully out-of-bounds DMA; the in-kernel guard/row mask
        # makes the clamped duplicate tile contribute nothing.
        return (jnp.minimum(co * tiles_per_core + i, n_tiles - 1), 0)

    kernel = functools.partial(
        _fused_ls_ce_kernel,
        n_patch_rows=n_patch,
        n_cls_rows=n_cls,
        n_tiles=n_tiles,
        tiles_per_core=tiles_per_core,
        smoothing=float(smoothing),
        aux_r=float(aux_r),
    )

    n_rows = n_cls + n_patch
    cost = pl.CostEstimate(
        flops=int(8 * n_rows * c),
        transcendentals=int(n_rows * (c + 1)),
        bytes_accessed=int(n_patch * c * p_bytes + n_cls * c * c_bytes
                           + n_rows * 4 + num_cores * 4),
    )

    cp_kwargs = dict(dimension_semantics=("parallel", "arbitrary"))
    if vmem_limit is not None:
        cp_kwargs["vmem_limit_bytes"] = int(vmem_limit)

    partials = pl.pallas_call(
        kernel,
        out_shape=jax.ShapeDtypeStruct((num_cores, 1, 1), jnp.float32),
        grid_spec=pltpu.PrefetchScalarGridSpec(
            num_scalar_prefetch=0,
            grid=(num_cores, tiles_per_core),
            in_specs=[
                pl.BlockSpec((n_cls, c), lambda co, i: (0, 0)),   # class logits (resident)
                pl.BlockSpec((n_cls, 1), lambda co, i: (0, 0)),   # class targets (resident)
                pl.BlockSpec((tm, c), patch_block),               # patch logits tile
                pl.BlockSpec((tm, 1), patch_block),               # patch targets tile
            ],
            out_specs=pl.BlockSpec((1, 1, 1), lambda co, i: (co, 0, 0)),
            scratch_shapes=[pltpu.VMEM((1, 1, 1), jnp.float32)],  # running scalar accumulator
        ),
        compiler_params=pltpu.CompilerParams(**cp_kwargs),
        cost_estimate=cost,
    )(cls_x, cls_t, px, pt)

    return jnp.sum(partials)


def custom_label_smoothing(inputs, targets, smoothing=0.1, aux_r=5):
    """Matches CustomLabelSmoothing.forward semantics (forward only)."""
    class_pred, patch_pred = inputs
    class_tar, patch_tar = targets
    _, _, num_classes = patch_pred.shape

    # free, copy-less reshapes (contiguous); no dtype upcast in the wrapper
    patch_pred2 = patch_pred.reshape(-1, num_classes)
    patch_tar2 = patch_tar.reshape(-1, 1).astype(jnp.int32)
    class_tar2 = class_tar.reshape(-1, 1).astype(jnp.int32)

    # TODO(synk): for very small C (e.g. 32 << 128 lanes) a lane-dense row-packed layout
    # with segmented reductions would recover ~4x vector throughput; skipped because the
    # kernel is HBM-bound in the general case and the change is neutral there.
    return _fused_label_smoothing_loss(
        class_pred, class_tar2, patch_pred2, patch_tar2,
        smoothing=float(smoothing), aux_r=float(aux_r))


# ---------------- pure-JAX reference (for the in-script correctness check) --------------

def _ref_ls_ce(x, t, smoothing):
    logp = jax.nn.log_softmax(x.astype(jnp.float32), axis=-1)
    nll = -jnp.take_along_axis(logp, t[:, None].astype(jnp.int32), axis=-1)[:, 0]
    smooth = -logp.mean(axis=-1)
    return ((1.0 - smoothing) * nll + smoothing * smooth).mean()


def _ref_custom(inputs, targets, smoothing=0.1, aux_r=5):
    class_pred, patch_pred = inputs
    class_tar, patch_tar = targets
    num_classes = patch_pred.shape[-1]
    return (_ref_ls_ce(class_pred, class_tar, smoothing)
            + _ref_ls_ce(patch_pred.reshape(-1, num_classes),
                         patch_tar.reshape(-1), smoothing) * aux_r)


if __name__ == "__main__":
    key = jax.random.PRNGKey(0)
    k1, k2, k3, k4 = jax.random.split(key, 4)

    B, W, C = 8, 16, 32  # batch, word_size (patches), num_classes
    smoothing, aux_r = 0.1, 5

    class_pred = jax.random.normal(k1, (B, C), dtype=jnp.float32)
    patch_pred = jax.random.normal(k2, (B, W, C), dtype=jnp.float32)
    class_tar = jax.random.randint(k3, (B,), 0, C, dtype=jnp.int32)
    patch_tar = jax.random.randint(k4, (B, W), 0, C, dtype=jnp.int32)

    inputs = (class_pred, patch_pred)
    targets = (class_tar, patch_tar)

    loss = custom_label_smoothing(inputs, targets, smoothing=smoothing, aux_r=aux_r)
    loss = jax.block_until_ready(loss)

    ref = _ref_custom(inputs, targets, smoothing=smoothing, aux_r=aux_r)
    assert jnp.allclose(loss, ref, rtol=1e-5, atol=5e-5), (loss, ref)

    print("KERNEL_OK")
</pallas_src>

<mosaic_0001>
module attributes {stable_mosaic.version = 11 : i64} {
  func.func @_fused_ls_ce_kernel(%arg0: i32, %arg1: i32, %arg2: memref<8x32xf32, #tpu.memory_space<vmem>>, %arg3: memref<8x1xi32, #tpu.memory_space<vmem>>, %arg4: memref<128x32xf32, #tpu.memory_space<vmem>>, %arg5: memref<128x1xi32, #tpu.memory_space<vmem>>, %arg6: memref<1x1x1xf32, #tpu.memory_space<vmem>>, %arg7: memref<1x1x1xf32, #tpu.memory_space<vmem>>) attributes {dimension_semantics = [#tpu.dimension_semantics<parallel>, #tpu.dimension_semantics<arbitrary>], iteration_bounds = array<i64: 1, 1>, scalar_prefetch = 0 : i64, scratch_operands = 1 : i64, tpu.core_type = #tpu.core_type<tc>, window_params = [{pipeline_mode = #tpu.pipeline_mode<synchronous>, transform_indices = @transform_0, window_bounds = array<i64: 8, 32>}, {pipeline_mode = #tpu.pipeline_mode<synchronous>, transform_indices = @transform_1, window_bounds = array<i64: 8, 1>}, {transform_indices = @transform_2, window_bounds = array<i64: 128, 32>}, {transform_indices = @transform_3, window_bounds = array<i64: 128, 1>}, {transform_indices = @transform_4, window_bounds = array<i64: 1, 1, 1>}]} {
    %c1_i32 = arith.constant 1 : i32
    %0 = arith.muli %arg0, %c1_i32 : i32
    %1 = arith.addi %0, %arg1 : i32
    %c0_i32 = arith.constant 0 : i32
    %2 = arith.cmpi eq, %arg1, %c0_i32 : i32
    %3 = arith.extui %2 : i1 to i32
    %c0_i32_0 = arith.constant 0 : i32
    %4 = arith.cmpi ne, %3, %c0_i32_0 : i32
    scf.if %4 {
      %cst = arith.constant 0.000000e+00 : f32
      %16 = vector.broadcast %cst : f32 to vector<1x1x1xf32>
      %c0 = arith.constant 0 : index
      %c0_8 = arith.constant 0 : index
      %c0_9 = arith.constant 0 : index
      %17 = vector.load %arg7[%c0, %c0_8, %c0_9] : memref<1x1x1xf32, #tpu.memory_space<vmem>>, vector<1x1x1xf32>
      tpu.vector_store %arg7[%c0, %c0_8, %c0_9], %16 {strides = array<i32>} : memref<1x1x1xf32, #tpu.memory_space<vmem>>, vector<1x1x1xf32>,
    } else {
    }
    %c0_i32_1 = arith.constant 0 : i32
    %5 = arith.cmpi eq, %arg0, %c0_i32_1 : i32
    %c0_i32_2 = arith.constant 0 : i32
    %6 = arith.cmpi eq, %arg1, %c0_i32_2 : i32
    %7 = arith.andi %5, %6 : i1
    %8 = arith.extui %7 : i1 to i32
    %c0_i32_3 = arith.constant 0 : i32
    %9 = arith.cmpi ne, %8, %c0_i32_3 : i32
    scf.if %9 {
      %c0 = arith.constant 0 : index
      %c0_8 = arith.constant 0 : index
      %16 = vector.load %arg2[%c0, %c0_8] : memref<8x32xf32, #tpu.memory_space<vmem>>, vector<8x32xf32>
      %c0_9 = arith.constant 0 : index
      %c0_10 = arith.constant 0 : index
      %17 = vector.load %arg3[%c0_9, %c0_10] : memref<8x1xi32, #tpu.memory_space<vmem>>, vector<8x1xi32>
      %cst = arith.constant dense<0xFF800000> : vector<8xf32>
      %18 = vector.multi_reduction <maximumf>, %16, %cst [1] : vector<8x32xf32> to vector<8xf32>
      %19 = vector.shape_cast %18 : vector<8xf32> to vector<8x1xf32>
      %20 = vector.broadcast %19 : vector<8x1xf32> to vector<8x32xf32>
      %21 = arith.subf %16, %20 : vector<8x32xf32>
      %22 = math.exp %21 : vector<8x32xf32>
      %cst_11 = arith.constant dense<0.000000e+00> : vector<8xf32>
      %23 = vector.multi_reduction <add>, %22, %cst_11 [1] : vector<8x32xf32> to vector<8xf32>
      %24 = vector.shape_cast %23 : vector<8xf32> to vector<8x1xf32>
      %25 = math.log %24 : vector<8x1xf32>
      %26 = arith.addf %19, %25 : vector<8x1xf32>
      %cst_12 = arith.constant dense<0.000000e+00> : vector<8xf32>
      %27 = vector.multi_reduction <add>, %16, %cst_12 [1] : vector<8x32xf32> to vector<8xf32>
      %28 = vector.shape_cast %27 : vector<8xf32> to vector<8x1xf32>
      %29 = tpu.iota {dimensions = array<i32: 1>} : vector<8x32xi32>
      %30 = vector.broadcast %17 : vector<8x1xi32> to vector<8x32xi32>
      %31 = arith.cmpi eq, %29, %30 : vector<8x32xi32>
      %cst_13 = arith.constant 0.000000e+00 : f32
      %32 = vector.broadcast %cst_13 : f32 to vector<8x32xf32>
      %33 = arith.select %31, %16, %32 : vector<8x32xi1>, vector<8x32xf32>
      %cst_14 = arith.constant dense<0.000000e+00> : vector<8xf32>
      %34 = vector.multi_reduction <add>, %33, %cst_14 [1] : vector<8x32xf32> to vector<8xf32>
      %35 = vector.shape_cast %34 : vector<8xf32> to vector<8x1xf32>
      %36 = arith.subf %26, %35 : vector<8x1xf32>
      %cst_15 = arith.constant 0.899999976 : f32
      %37 = vector.broadcast %cst_15 : f32 to vector<8x1xf32>
      %38 = arith.mulf %37, %36 : vector<8x1xf32>
      %cst_16 = arith.constant 3.200000e+01 : f32
      %39 = vector.broadcast %cst_16 : f32 to vector<8x1xf32>
      %40 = arith.mulf %39, %26 : vector<8x1xf32>
      %41 = arith.subf %40, %28 : vector<8x1xf32>
      %cst_17 = arith.constant 3.125000e-03 : f32
      %42 = vector.broadcast %cst_17 : f32 to vector<8x1xf32>
      %43 = arith.mulf %42, %41 : vector<8x1xf32>
      %44 = arith.addf %38, %43 : vector<8x1xf32>
      %c0_18 = arith.constant 0 : index
      %c0_19 = arith.constant 0 : index
      %c0_20 = arith.constant 0 : index
      %45 = vector.load %arg7[%c0_18, %c0_19, %c0_20] : memref<1x1x1xf32, #tpu.memory_space<vmem>>, vector<1x1x1xf32>
      %46 = vector.shape_cast %44 : vector<8x1xf32> to vector<1x8x1xf32>
      %cst_21 = arith.constant dense<0.000000e+00> : vector<1xf32>
      %47 = vector.multi_reduction <add>, %46, %cst_21 [1, 2] : vector<1x8x1xf32> to vector<1xf32>
      %48 = vector.shape_cast %47 : vector<1xf32> to vector<1x1x1xf32>
      %49 = vector.extract %48[0, 0, 0] : f32 from vector<1x1x1xf32>
      %cst_22 = arith.constant 1.250000e-01 : f32
      %50 = arith.mulf %49, %cst_22 : f32
      %51 = vector.broadcast %50 : f32 to vector<1x1x1xf32>
      %52 = arith.addf %45, %51 : vector<1x1x1xf32>
      %c0_23 = arith.constant 0 : index
      %c0_24 = arith.constant 0 : index
      %c0_25 = arith.constant 0 : index
      %53 = vector.load %arg7[%c0_23, %c0_24, %c0_25] : memref<1x1x1xf32, #tpu.memory_space<vmem>>, vector<1x1x1xf32>
      tpu.vector_store %arg7[%c0_23, %c0_24, %c0_25], %52 {strides = array<i32>} : memref<1x1x1xf32, #tpu.memory_space<vmem>>, vector<1x1x1xf32>,
    } else {
    }
    %c1_i32_4 = arith.constant 1 : i32
    %10 = arith.cmpi slt, %1, %c1_i32_4 : i32
    %11 = arith.extui %10 : i1 to i32
    %c0_i32_5 = arith.constant 0 : i32
    %12 = arith.cmpi ne, %11, %c0_i32_5 : i32
    scf.if %12 {
      %c0 = arith.constant 0 : index
      %c0_8 = arith.constant 0 : index
      %16 = vector.load %arg4[%c0, %c0_8] : memref<128x32xf32, #tpu.memory_space<vmem>>, vector<128x32xf32>
      %c0_9 = arith.constant 0 : index
      %c0_10 = arith.constant 0 : index
      %17 = vector.load %arg5[%c0_9, %c0_10] : memref<128x1xi32, #tpu.memory_space<vmem>>, vector<128x1xi32>
      %cst = arith.constant dense<0xFF800000> : vector<128xf32>
      %18 = vector.multi_reduction <maximumf>, %16, %cst [1] : vector<128x32xf32> to vector<128xf32>
      %19 = vector.shape_cast %18 : vector<128xf32> to vector<128x1xf32>
      %20 = vector.broadcast %19 : vector<128x1xf32> to vector<128x32xf32>
      %21 = arith.subf %16, %20 : vector<128x32xf32>
      %22 = math.exp %21 : vector<128x32xf32>
      %cst_11 = arith.constant dense<0.000000e+00> : vector<128xf32>
      %23 = vector.multi_reduction <add>, %22, %cst_11 [1] : vector<128x32xf32> to vector<128xf32>
      %24 = vector.shape_cast %23 : vector<128xf32> to vector<128x1xf32>
      %25 = math.log %24 : vector<128x1xf32>
      %26 = arith.addf %19, %25 : vector<128x1xf32>
      %cst_12 = arith.constant dense<0.000000e+00> : vector<128xf32>
      %27 = vector.multi_reduction <add>, %16, %cst_12 [1] : vector<128x32xf32> to vector<128xf32>
      %28 = vector.shape_cast %27 : vector<128xf32> to vector<128x1xf32>
      %29 = tpu.iota {dimensions = array<i32: 1>} : vector<128x32xi32>
      %30 = vector.broadcast %17 : vector<128x1xi32> to vector<128x32xi32>
      %31 = arith.cmpi eq, %29, %30 : vector<128x32xi32>
      %cst_13 = arith.constant 0.000000e+00 : f32
      %32 = vector.broadcast %cst_13 : f32 to vector<128x32xf32>
      %33 = arith.select %31, %16, %32 : vector<128x32xi1>, vector<128x32xf32>
      %cst_14 = arith.constant dense<0.000000e+00> : vector<128xf32>
      %34 = vector.multi_reduction <add>, %33, %cst_14 [1] : vector<128x32xf32> to vector<128xf32>
      %35 = vector.shape_cast %34 : vector<128xf32> to vector<128x1xf32>
      %36 = arith.subf %26, %35 : vector<128x1xf32>
      %cst_15 = arith.constant 0.899999976 : f32
      %37 = vector.broadcast %cst_15 : f32 to vector<128x1xf32>
      %38 = arith.mulf %37, %36 : vector<128x1xf32>
      %cst_16 = arith.constant 3.200000e+01 : f32
      %39 = vector.broadcast %cst_16 : f32 to vector<128x1xf32>
      %40 = arith.mulf %39, %26 : vector<128x1xf32>
      %41 = arith.subf %40, %28 : vector<128x1xf32>
      %cst_17 = arith.constant 3.125000e-03 : f32
      %42 = vector.broadcast %cst_17 : f32 to vector<128x1xf32>
      %43 = arith.mulf %42, %41 : vector<128x1xf32>
      %44 = arith.addf %38, %43 : vector<128x1xf32>
      %c128_i32 = arith.constant 128 : i32
      %45 = arith.muli %1, %c128_i32 : i32
      %46 = tpu.iota {dimensions = array<i32: 0>} : vector<128x1xi32>
      %47 = vector.broadcast %45 : i32 to vector<128x1xi32>
      %48 = arith.addi %47, %46 : vector<128x1xi32>
      %c128_i32_18 = arith.constant 128 : i32
      %49 = vector.broadcast %c128_i32_18 : i32 to vector<128x1xi32>
      %50 = arith.cmpi slt, %48, %49 : vector<128x1xi32>
      %cst_19 = arith.constant 0.000000e+00 : f32
      %51 = vector.broadcast %cst_19 : f32 to vector<128x1xf32>
      %52 = arith.select %50, %44, %51 : vector<128x1xi1>, vector<128x1xf32>
      %c0_20 = arith.constant 0 : index
      %c0_21 = arith.constant 0 : index
      %c0_22 = arith.constant 0 : index
      %53 = vector.load %arg7[%c0_20, %c0_21, %c0_22] : memref<1x1x1xf32, #tpu.memory_space<vmem>>, vector<1x1x1xf32>
      %54 = vector.shape_cast %52 : vector<128x1xf32> to vector<1x128x1xf32>
      %cst_23 = arith.constant dense<0.000000e+00> : vector<1xf32>
      %55 = vector.multi_reduction <add>, %54, %cst_23 [1, 2] : vector<1x128x1xf32> to vector<1xf32>
      %56 = vector.shape_cast %55 : vector<1xf32> to vector<1x1x1xf32>
      %57 = vector.extract %56[0, 0, 0] : f32 from vector<1x1x1xf32>
      %cst_24 = arith.constant 3.906250e-02 : f32
      %58 = arith.mulf %57, %cst_24 : f32
      %59 = vector.broadcast %58 : f32 to vector<1x1x1xf32>
      %60 = arith.addf %53, %59 : vector<1x1x1xf32>
      %c0_25 = arith.constant 0 : index
      %c0_26 = arith.constant 0 : index
      %c0_27 = arith.constant 0 : index
      %61 = vector.load %arg7[%c0_25, %c0_26, %c0_27] : memref<1x1x1xf32, #tpu.memory_space<vmem>>, vector<1x1x1xf32>
      tpu.vector_store %arg7[%c0_25, %c0_26, %c0_27], %60 {strides = array<i32>} : memref<1x1x1xf32, #tpu.memory_space<vmem>>, vector<1x1x1xf32>,
    } else {
    }
    %c0_i32_6 = arith.constant 0 : i32
    %13 = arith.cmpi eq, %arg1, %c0_i32_6 : i32
    %14 = arith.extui %13 : i1 to i32
    %c0_i32_7 = arith.constant 0 : i32
    %15 = arith.cmpi ne, %14, %c0_i32_7 : i32
    scf.if %15 {
      %c0 = arith.constant 0 : index
      %c0_8 = arith.constant 0 : index
      %c0_9 = arith.constant 0 : index
      %16 = vector.load %arg7[%c0, %c0_8, %c0_9] : memref<1x1x1xf32, #tpu.memory_space<vmem>>, vector<1x1x1xf32>
      %c0_10 = arith.constant 0 : index
      %c0_11 = arith.constant 0 : index
      %c0_12 = arith.constant 0 : index
      %17 = vector.load %arg6[%c0_10, %c0_11, %c0_12] : memref<1x1x1xf32, #tpu.memory_space<vmem>>, vector<1x1x1xf32>
      tpu.vector_store %arg6[%c0_10, %c0_11, %c0_12], %16 {strides = array<i32>} : memref<1x1x1xf32, #tpu.memory_space<vmem>>, vector<1x1x1xf32>,
    } else {
    }
    return
  }
  func.func @transform_0(%arg0: i32, %arg1: i32) -> (i32, i32) {
    %c0_i32 = arith.constant 0 : i32
    %c0_i32_0 = arith.constant 0 : i32
    %c0_i32_1 = arith.constant 0 : i32
    return %c0_i32, %c0_i32_0 : i32, i32
  }
  func.func @transform_1(%arg0: i32, %arg1: i32) -> (i32, i32) {
    %c0_i32 = arith.constant 0 : i32
    %c0_i32_0 = arith.constant 0 : i32
    %c0_i32_1 = arith.constant 0 : i32
    return %c0_i32, %c0_i32_0 : i32, i32
  }
  func.func @transform_2(%arg0: i32, %arg1: i32) -> (i32, i32) {
    %c1_i32 = arith.constant 1 : i32
    %0 = arith.muli %arg0, %c1_i32 : i32
    %1 = arith.addi %0, %arg1 : i32
    %c0_i32 = arith.constant 0 : i32
    %2 = arith.minsi %1, %c0_i32 : i32
    %c0_i32_0 = arith.constant 0 : i32
    %c0_i32_1 = arith.constant 0 : i32
    return %2, %c0_i32_0 : i32, i32
  }
  func.func @transform_3(%arg0: i32, %arg1: i32) -> (i32, i32) {
    %c1_i32 = arith.constant 1 : i32
    %0 = arith.muli %arg0, %c1_i32 : i32
    %1 = arith.addi %0, %arg1 : i32
    %c0_i32 = arith.constant 0 : i32
    %2 = arith.minsi %1, %c0_i32 : i32
    %c0_i32_0 = arith.constant 0 : i32
    %c0_i32_1 = arith.constant 0 : i32
    return %2, %c0_i32_0 : i32, i32
  }
  func.func @transform_4(%arg0: i32, %arg1: i32) -> (i32, i32, i32) {
    %c0_i32 = arith.constant 0 : i32
    %c0_i32_0 = arith.constant 0 : i32
    %c0_i32_1 = arith.constant 0 : i32
    return %arg0, %c0_i32, %c0_i32_0 : i32, i32, i32
  }
}

</mosaic_0001>

<llo_original>
// kernel: tpu_custom_call.1
$region0: #{tpu_custom_call.1}
  #allocation0 [shape = 'u32[]', space=smem, size = 0x4, offset = 0x4, fixed_abs, tag = 'smem constant byte address 0x4 - core index']
  #allocation1 [shape = 'u32[144,128]{1,0:T(1,128)}', space=vmem, size = 0x12000, scoped, tag = 'internal scratch']
  #allocation2 [shape = 'f32[1,1,1]{2,1,0:T(1,128)}', space=vmem, size = 0x200, scoped, tag = 'scratch operand']
  %s0 = inlined_call_operand.vmem [shape: f32[8,32], index: 0, kind: input, shape index: {}]
  %s1 = inlined_call_operand.vmem [shape: s32[8,1], index: 1, kind: input, shape index: {}]
  %s2 = inlined_call_operand.vmem [shape: f32[128,32], index: 2, kind: input, shape index: {}]
  %s3 = inlined_call_operand.vmem [shape: s32[128,1], index: 3, kind: input, shape index: {}]
  %s4 = inlined_call_operand.hbm [shape: f32[1,1,1], index: 4, kind: output, shape index: {}]
  %s5 = sld [smem:[#allocation0]]
  $region42: #{tpu_custom_call.1} parent=0
    _
  %s7 = ssub.s32 1, %s5
  %s8 = scalar_select 0, %s7, %s5
  $region1: #{tpu_custom_call.1} parent=0
    #allocation3 [shape = 'u8[512]{0}', space=vmem, size = 0x400, scoped, tag = 'output window, operand 0, single buffered']
    #allocation4 [shape = 's32[1]{0}', space=sflag, size = 0x4, scoped, tag = 'scoped memory for tpu_custom_call.1']
    %9 = vsyncpa [#allocation4], 0
    // Predicated region
    $region2: #{tpu_custom_call.1} parent=1 // pred_check
      _
    $region3: #{tpu_custom_call.1} parent=1 // pred_check_branch
      %11 = sbr.rel (0) target = $region5
    $region4: #{tpu_custom_call.1} parent=1 // pred_region
      _
    $region5: #{tpu_custom_call.1} parent=1 // pred_fallthru
      _
    // Predicated region
    $region6: #{tpu_custom_call.1} parent=1 // pred_check
      _
    $region7: #{tpu_custom_call.1} parent=1 // pred_check_branch
      %13 = sbr.rel (0) target = $region9
    $region8: #{tpu_custom_call.1} parent=1 // pred_region
      _
    $region9: #{tpu_custom_call.1} parent=1 // pred_fallthru
      _
    // Predicated region
    $region10: #{tpu_custom_call.1} parent=1 // pred_check
      _
    $region11: #{tpu_custom_call.1} parent=1 // pred_check_branch
      %15 = sbr.rel (0) target = $region13
    $region12: #{tpu_custom_call.1} parent=1 // pred_region
      %s16 = sadd.s32 0, 0
      %p17 = scmp.lt.s32.totalorder %s16, 0
      %s18 = scalar_select %p17, %s16, 0
      %s19 = smul.u32 16, %s18
      %p20 = scmp.lt.s32.totalorder %s19, 15
      %s21 = scalar_select %p20, %s19, 15
      %s22 = smul.addr %s21, 8
      %s23 = scalar_lea.vmem %s2, %s22
      %s24 = sadd.s32 0, 0
      %p25 = scmp.lt.s32.totalorder %s24, 0
      %s26 = scalar_select %p25, %s24, 0
      %s27 = smul.u32 16, %s26
    $region13: #{tpu_custom_call.1} parent=1 // pred_fallthru
      _
    // Predicated region
    $region14: #{tpu_custom_call.1} parent=1 // pred_check
      _
    $region15: #{tpu_custom_call.1} parent=1 // pred_check_branch
      %29 = sbr.rel (0) target = $region17
    $region16: #{tpu_custom_call.1} parent=1 // pred_region
      %s30 = sadd.s32 0, 0
      %p31 = scmp.lt.s32.totalorder %s30, 0
      %s32 = scalar_select %p31, %s30, 0
      %s33 = smul.u32 16, %s32
      %p34 = scmp.lt.s32.totalorder %s33, 15
      %s35 = scalar_select %p34, %s33, 15
      %s36 = smul.addr %s35, 8
      %s37 = scalar_lea.vmem %s3, %s36
      %s38 = sadd.s32 0, 0
      %p39 = scmp.lt.s32.totalorder %s38, 0
      %s40 = scalar_select %p39, %s38, 0
      %s41 = smul.u32 16, %s40
    $region17: #{tpu_custom_call.1} parent=1 // pred_fallthru
      _
    %s42 = sadd.s32 0, 0
    %p43 = scmp.lt.s32.totalorder %s42, 0
    %s44 = scalar_select %p43, %s42, 0
    %s45 = smul.u32 16, %s44
    %p46 = scmp.lt.s32.totalorder %s45, 15
    %s47 = scalar_select %p46, %s45, 15
    %s48 = smul.addr %s47, 8
    %s49 = scalar_lea.vmem %s2, %s48
    %s50 = sadd.s32 0, 0
    %p51 = scmp.lt.s32.totalorder %s50, 0
    %s52 = scalar_select %p51, %s50, 0
    %s53 = smul.u32 16, %s52
    %p54 = scmp.lt.s32.totalorder %s53, 15
    %s55 = scalar_select %p54, %s53, 15
    %s56 = smul.addr %s55, 8
    %s57 = scalar_lea.vmem %s3, %s56
    %s58 = sadd.s32 0, 0
    %p59 = scmp.lt.s32.totalorder %s58, 0
    %s60 = scalar_select %p59, %s58, 0
    %s61 = smul.u32 16, %s60
    %p62 = scmp.lt.s32.totalorder %s61, 15
    %s63 = scalar_select %p62, %s61, 15
    %s64 = smul.addr %s63, 8
    %s65 = scalar_lea.vmem %s2, %s64
    %s66 = sadd.s32 0, 0
    %p67 = scmp.lt.s32.totalorder %s66, 0
    %s68 = scalar_select %p67, %s66, 0
    %s69 = smul.u32 16, %s68
    %s70 = sadd.s32 0, 0
    %p71 = scmp.lt.s32.totalorder %s70, 0
    %s72 = scalar_select %p71, %s70, 0
    %s73 = smul.u32 16, %s72
    %p74 = scmp.lt.s32.totalorder %s73, 15
    %s75 = scalar_select %p74, %s73, 15
    %s76 = smul.addr %s75, 8
    %s77 = scalar_lea.vmem %s3, %s76
    %s78 = sadd.s32 0, 0
    %p79 = scmp.lt.s32.totalorder %s78, 0
    %s80 = scalar_select %p79, %s78, 0
    %s81 = smul.u32 16, %s80
    %s82 = sadd.s32 0, 0
    %p83 = scmp.eq.s32.totalorder 0, 0
    // Predicated region
    $region18: #{tpu_custom_call.1} parent=1 // pred_check
      %p84 = pneg %p83
    $region19: #{tpu_custom_call.1} parent=1 // pred_check_branch
      %86 = sbr.rel (%p84) target = $region21
    $region20: #{tpu_custom_call.1} parent=1 // pred_region
      %vm87 = vcmask 0
      %88 = vst.msk [vmem:[#allocation2] sm:$0x1] %vm87, 0.0
    $region21: #{tpu_custom_call.1} parent=1 // pred_fallthru
      _
    %p89 = scmp.eq.s32.totalorder 0, 0
    %p90 = pnand %p89, %p83
    %p91 = pneg %p90
    // Predicated region
    $region22: #{tpu_custom_call.1} parent=1 // pred_check
      _
    $region23: #{tpu_custom_call.1} parent=1 // pred_check_branch
      %93 = sbr.rel (%p90) target = $region25
    $region24: #{tpu_custom_call.1} parent=1 // pred_region
      %v94 = vld [vmem:[%s0] sm:$0xff]
      %v95 = vld [vmem:[%s1] sm:$0xff]
      %vm96 = vcmask 261120
      %v97 = vsel %vm96, %v94, -inf
      %98 = vmax.xlane.f32.xlu0 %v97
      %v99 = vpop.xlane.xlu0 %98
      %v100 = vsub.f32 %v94, %v99
      %v101 = vmul.f32 %v100, 1.442695
      %v102 = vpow.pop %v101
      %v103 = vsel %vm96, %v102, 0.0
      %104 = vadd.xlane.f32.xlu0 %v103
      %v105 = vpop.xlane.xlu0 %104
      %v106 = vlog2.pop %v105
      %v107 = vmul.f32 %v106, 0.6931472
      %v108 = vadd.f32 %v99, %v107
      %v109 = vsel %vm96, %v94, 0.0
      %110 = vadd.xlane.f32.xlu0 %v109
      %v111 = vpop.xlane.xlu0 %110
      %v112 = vlaneseq
      %v113 = vand.u32 %v112, 127
      %114 = vset.pattern.permute.xlu0 0
      %115 = vperm.xlu0 %114, %v95
      %v116 = vpop.permute.xlu0 %115
      %vm117 = vcmp.eq.s32.totalorder %v113, %v116
      %v118 = vsel %vm117, %v94, 0.0
      %v119 = vsel %vm96, %v118, 0.0
      %120 = vadd.xlane.f32.xlu0 %v119
      %v121 = vpop.xlane.xlu0 %120
      %v122 = vsub.f32 %v108, %v121
      %v123 = vmul.f32 %v122, 0.9
      %v124 = vmul.f32 %v108, 32.0
      %v125 = vsub.f32 %v124, %v111
      %v126 = vmul.f32 %v125, 0.003125
      %v127 = vadd.f32 %v123, %v126
      %v128 = vld [vmem:[#allocation2] sm:$0x1]
      %vm129 = vcmask 7168
      %v130 = vsel %vm129, %v127, 0.0
      %131 = vadd.xlane.f32.xlu0 %v130
      %v132 = vpop.xlane.xlu0 %131
      %v133 = vrot.slane %v132, 4
      %v134 = vadd.f32 %v132, %v133
      %v135 = vrot.slane %v134, 2
      %v136 = vadd.f32 %v134, %v135
      %v137 = vrot.slane %v136, 1
      %v138 = vadd.f32 %v136, %v137
      %s139 = vtos %v138
      %s140 = smul.f32 %s139, 0.125
      %v141 = vstv %s140
      %v142 = vadd.f32 %v128, %v141
      %vm143 = vcmask 0
      %144 = vst.msk [vmem:[#allocation2] sm:$0x1] %vm143, %v142
    $region25: #{tpu_custom_call.1} parent=1 // pred_fallthru
      _
    %p145 = scmp.lt.s32.totalorder %s82, 1
    // Predicated region
    $region26: #{tpu_custom_call.1} parent=1 // pred_check
      %p146 = pneg %p145
    $region27: #{tpu_custom_call.1} parent=1 // pred_check_branch
      %148 = sbr.rel (%p146) target = $region29
    $region28: #{tpu_custom_call.1} parent=1 // pred_region
      %v149 = vld [vmem:[%s65] sm:$0xff]
      %v150 = vld [vmem:[%s65 + $0x8] sm:$0xff]
      %v151 = vld [vmem:[%s65 + $0x10] sm:$0xff]
      %v152 = vld [vmem:[%s65 + $0x18] sm:$0xff]
      %v153 = vld [vmem:[%s65 + $0x20] sm:$0xff]
      %v154 = vld [vmem:[%s65 + $0x28] sm:$0xff]
      %v155 = vld [vmem:[%s65 + $0x30] sm:$0xff]
      %v156 = vld [vmem:[%s65 + $0x38] sm:$0xff]
      %v157 = vld [vmem:[%s65 + $0x40] sm:$0xff]
      %v158 = vld [vmem:[%s65 + $0x48] sm:$0xff]
      %v159 = vld [vmem:[%s65 + $0x50] sm:$0xff]
      %v160 = vld [vmem:[%s65 + $0x58] sm:$0xff]
      %v161 = vld [vmem:[%s65 + $0x60] sm:$0xff]
      %v162 = vld [vmem:[%s65 + $0x68] sm:$0xff]
      %v163 = vld [vmem:[%s65 + $0x70] sm:$0xff]
      %v164 = vld [vmem:[%s65 + $0x78] sm:$0xff]
      %v165 = vld [vmem:[%s77] sm:$0xff]
      %v166 = vld [vmem:[%s77 + $0x8] sm:$0xff]
      %v167 = vld [vmem:[%s77 + $0x10] sm:$0xff]
      %v168 = vld [vmem:[%s77 + $0x18] sm:$0xff]
      %v169 = vld [vmem:[%s77 + $0x20] sm:$0xff]
      %v170 = vld [vmem:[%s77 + $0x28] sm:$0xff]
      %v171 = vld [vmem:[%s77 + $0x30] sm:$0xff]
      %v172 = vld [vmem:[%s77 + $0x38] sm:$0xff]
      %v173 = vld [vmem:[%s77 + $0x40] sm:$0xff]
      %v174 = vld [vmem:[%s77 + $0x48] sm:$0xff]
      %v175 = vld [vmem:[%s77 + $0x50] sm:$0xff]
      %v176 = vld [vmem:[%s77 + $0x58] sm:$0xff]
      %v177 = vld [vmem:[%s77 + $0x60] sm:$0xff]
      %v178 = vld [vmem:[%s77 + $0x68] sm:$0xff]
      %v179 = vld [vmem:[%s77 + $0x70] sm:$0xff]
      %v180 = vld [vmem:[%s77 + $0x78] sm:$0xff]
      %vm181 = vcmask 261120
      %v182 = vsel %vm181, %v149, -inf
      %183 = vmax.xlane.f32.xlu0 %v182
      %v184 = vpop.xlane.xlu0 %183
      %v185 = vsel %vm181, %v150, -inf
      %186 = vmax.xlane.f32.xlu0 %v185
      %v187 = vpop.xlane.xlu0 %186
      %v188 = vsel %vm181, %v151, -inf
      %189 = vmax.xlane.f32.xlu0 %v188
      %v190 = vpop.xlane.xlu0 %189
      %v191 = vsel %vm181, %v152, -inf
      %192 = vmax.xlane.f32.xlu0 %v191
      %v193 = vpop.xlane.xlu0 %192
      %v194 = vsel %vm181, %v153, -inf
      %195 = vmax.xlane.f32.xlu0 %v194
      %v196 = vpop.xlane.xlu0 %195
      %v197 = vsel %vm181, %v154, -inf
      %198 = vmax.xlane.f32.xlu0 %v197
      %v199 = vpop.xlane.xlu0 %198
      %v200 = vsel %vm181, %v155, -inf
      %201 = vmax.xlane.f32.xlu0 %v200
      %v202 = vpop.xlane.xlu0 %201
      %v203 = vsel %vm181, %v156, -inf
      %204 = vmax.xlane.f32.xlu0 %v203
      %v205 = vpop.xlane.xlu0 %204
      %v206 = vsel %vm181, %v157, -inf
      %207 = vmax.xlane.f32.xlu0 %v206
      %v208 = vpop.xlane.xlu0 %207
      %v209 = vsel %vm181, %v158, -inf
      %210 = vmax.xlane.f32.xlu0 %v209
      %v211 = vpop.xlane.xlu0 %210
      %v212 = vsel %vm181, %v159, -inf
      %213 = vmax.xlane.f32.xlu0 %v212
      %v214 = vpop.xlane.xlu0 %213
      %v215 = vsel %vm181, %v160, -inf
      %216 = vmax.xlane.f32.xlu0 %v215
      %v217 = vpop.xlane.xlu0 %216
      %v218 = vsel %vm181, %v161, -inf
      %219 = vmax.xlane.f32.xlu0 %v218
      %v220 = vpop.xlane.xlu0 %219
      %v221 = vsel %vm181, %v162, -inf
      %222 = vmax.xlane.f32.xlu0 %v221
      %v223 = vpop.xlane.xlu0 %222
      %v224 = vsel %vm181, %v163, -inf
      %225 = vmax.xlane.f32.xlu0 %v224
      %v226 = vpop.xlane.xlu0 %225
      %v227 = vsel %vm181, %v164, -inf
      %228 = vmax.xlane.f32.xlu0 %v227
      %v229 = vpop.xlane.xlu0 %228
      %v230 = vsub.f32 %v149, %v184
      %v231 = vsub.f32 %v150, %v187
      %v232 = vsub.f32 %v151, %v190
      %v233 = vsub.f32 %v152, %v193
      %v234 = vsub.f32 %v153, %v196
      %v235 = vsub.f32 %v154, %v199
      %v236 = vsub.f32 %v155, %v202
      %v237 = vsub.f32 %v156, %v205
      %v238 = vsub.f32 %v157, %v208
      %v239 = vsub.f32 %v158, %v211
      %v240 = vsub.f32 %v159, %v214
      %v241 = vsub.f32 %v160, %v217
      %v242 = vsub.f32 %v161, %v220
      %v243 = vsub.f32 %v162, %v223
      %v244 = vsub.f32 %v163, %v226
      %v245 = vsub.f32 %v164, %v229
      %v246 = vmul.f32 %v230, 1.442695
      %v247 = vpow.pop %v246
      %v248 = vmul.f32 %v231, 1.442695
      %v249 = vpow.pop %v248
      %v250 = vmul.f32 %v232, 1.442695
      %v251 = vpow.pop %v250
      %v252 = vmul.f32 %v233, 1.442695
      %v253 = vpow.pop %v252
      %v254 = vmul.f32 %v234, 1.442695
      %v255 = vpow.pop %v254
      %v256 = vmul.f32 %v235, 1.442695
      %v257 = vpow.pop %v256
      %v258 = vmul.f32 %v236, 1.442695
      %v259 = vpow.pop %v258
      %v260 = vmul.f32 %v237, 1.442695
      %v261 = vpow.pop %v260
      %v262 = vmul.f32 %v238, 1.442695
      %v263 = vpow.pop %v262
      %v264 = vmul.f32 %v239, 1.442695
      %v265 = vpow.pop %v264
      %v266 = vmul.f32 %v240, 1.442695
      %v267 = vpow.pop %v266
      %v268 = vmul.f32 %v241, 1.442695
      %v269 = vpow.pop %v268
      %v270 = vmul.f32 %v242, 1.442695
      %v271 = vpow.pop %v270
      %v272 = vmul.f32 %v243, 1.442695
      %v273 = vpow.pop %v272
      %v274 = vmul.f32 %v244, 1.442695
      %v275 = vpow.pop %v274
      %v276 = vmul.f32 %v245, 1.442695
      %v277 = vpow.pop %v276
      %v278 = vsel %vm181, %v247, 0.0
      %279 = vadd.xlane.f32.xlu0 %v278
      %v280 = vpop.xlane.xlu0 %279
      %v281 = vsel %vm181, %v249, 0.0
      %282 = vadd.xlane.f32.xlu0 %v281
      %v283 = vpop.xlane.xlu0 %282
      %v284 = vsel %vm181, %v251, 0.0
      %285 = vadd.xlane.f32.xlu0 %v284
      %v286 = vpop.xlane.xlu0 %285
      %v287 = vsel %vm181, %v253, 0.0
      %288 = vadd.xlane.f32.xlu0 %v287
      %v289 = vpop.xlane.xlu0 %288
      %v290 = vsel %vm181, %v255, 0.0
      %291 = vadd.xlane.f32.xlu0 %v290
      %v292 = vpop.xlane.xlu0 %291
      %v293 = vsel %vm181, %v257, 0.0
      %294 = vadd.xlane.f32.xlu0 %v293
      %v295 = vpop.xlane.xlu0 %294
      %v296 = vsel %vm181, %v259, 0.0
      %297 = vadd.xlane.f32.xlu0 %v296
      %v298 = vpop.xlane.xlu0 %297
      %v299 = vsel %vm181, %v261, 0.0
      %300 = vadd.xlane.f32.xlu0 %v299
      %v301 = vpop.xlane.xlu0 %300
      %v302 = vsel %vm181, %v263, 0.0
      %303 = vadd.xlane.f32.xlu0 %v302
      %v304 = vpop.xlane.xlu0 %303
      %v305 = vsel %vm181, %v265, 0.0
      %306 = vadd.xlane.f32.xlu0 %v305
      %v307 = vpop.xlane.xlu0 %306
      %v308 = vsel %vm181, %v267, 0.0
      %309 = vadd.xlane.f32.xlu0 %v308
      %v310 = vpop.xlane.xlu0 %309
      %v311 = vsel %vm181, %v269, 0.0
      %312 = vadd.xlane.f32.xlu0 %v311
      %v313 = vpop.xlane.xlu0 %312
      %v314 = vsel %vm181, %v271, 0.0
      %315 = vadd.xlane.f32.xlu0 %v314
      %v316 = vpop.xlane.xlu0 %315
      %v317 = vsel %vm181, %v273, 0.0
      %318 = vadd.xlane.f32.xlu0 %v317
      %v319 = vpop.xlane.xlu0 %318
      %v320 = vsel %vm181, %v275, 0.0
      %321 = vadd.xlane.f32.xlu0 %v320
      %v322 = vpop.xlane.xlu0 %321
      %v323 = vsel %vm181, %v277, 0.0
      %324 = vadd.xlane.f32.xlu0 %v323
      %v325 = vpop.xlane.xlu0 %324
      %v326 = vlog2.pop %v280
      %v327 = vmul.f32 %v326, 0.6931472
      %v328 = vlog2.pop %v283
      %v329 = vmul.f32 %v328, 0.6931472
      %v330 = vlog2.pop %v286
      %v331 = vmul.f32 %v330, 0.6931472
      %v332 = vlog2.pop %v289
      %v333 = vmul.f32 %v332, 0.6931472
      %v334 = vlog2.pop %v292
      %v335 = vmul.f32 %v334, 0.6931472
      %v336 = vlog2.pop %v295
      %v337 = vmul.f32 %v336, 0.6931472
      %v338 = vlog2.pop %v298
      %v339 = vmul.f32 %v338, 0.6931472
      %v340 = vlog2.pop %v301
      %v341 = vmul.f32 %v340, 0.6931472
      %v342 = vlog2.pop %v304
      %v343 = vmul.f32 %v342, 0.6931472
      %v344 = vlog2.pop %v307
      %v345 = vmul.f32 %v344, 0.6931472
      %v346 = vlog2.pop %v310
      %v347 = vmul.f32 %v346, 0.6931472
      %v348 = vlog2.pop %v313
      %v349 = vmul.f32 %v348, 0.6931472
      %v350 = vlog2.pop %v316
      %v351 = vmul.f32 %v350, 0.6931472
      %v352 = vlog2.pop %v319
      %v353 = vmul.f32 %v352, 0.6931472
      %v354 = vlog2.pop %v322
      %v355 = vmul.f32 %v354, 0.6931472
      %v356 = vlog2.pop %v325
      %v357 = vmul.f32 %v356, 0.6931472
      %v358 = vadd.f32 %v184, %v327
      %v359 = vadd.f32 %v187, %v329
      %v360 = vadd.f32 %v190, %v331
      %v361 = vadd.f32 %v193, %v333
      %v362 = vadd.f32 %v196, %v335
      %v363 = vadd.f32 %v199, %v337
      %v364 = vadd.f32 %v202, %v339
      %v365 = vadd.f32 %v205, %v341
      %v366 = vadd.f32 %v208, %v343
      %v367 = vadd.f32 %v211, %v345
      %v368 = vadd.f32 %v214, %v347
      %v369 = vadd.f32 %v217, %v349
      %v370 = vadd.f32 %v220, %v351
      %v371 = vadd.f32 %v223, %v353
      %v372 = vadd.f32 %v226, %v355
      %v373 = vadd.f32 %v229, %v357
      %v374 = vsel %vm181, %v149, 0.0
      %375 = vadd.xlane.f32.xlu0 %v374
      %v376 = vpop.xlane.xlu0 %375
      %v377 = vsel %vm181, %v150, 0.0
      %378 = vadd.xlane.f32.xlu0 %v377
      %v379 = vpop.xlane.xlu0 %378
      %v380 = vsel %vm181, %v151, 0.0
      %381 = vadd.xlane.f32.xlu0 %v380
      %v382 = vpop.xlane.xlu0 %381
      %v383 = vsel %vm181, %v152, 0.0
      %384 = vadd.xlane.f32.xlu0 %v383
      %v385 = vpop.xlane.xlu0 %384
      %v386 = vsel %vm181, %v153, 0.0
      %387 = vadd.xlane.f32.xlu0 %v386
      %v388 = vpop.xlane.xlu0 %387
      %v389 = vsel %vm181, %v154, 0.0
      %390 = vadd.xlane.f32.xlu0 %v389
      %v391 = vpop.xlane.xlu0 %390
      %v392 = vsel %vm181, %v155, 0.0
      %393 = vadd.xlane.f32.xlu0 %v392
      %v394 = vpop.xlane.xlu0 %393
      %v395 = vsel %vm181, %v156, 0.0
      %396 = vadd.xlane.f32.xlu0 %v395
      %v397 = vpop.xlane.xlu0 %396
      %v398 = vsel %vm181, %v157, 0.0
      %399 = vadd.xlane.f32.xlu0 %v398
      %v400 = vpop.xlane.xlu0 %399
      %v401 = vsel %vm181, %v158, 0.0
      %402 = vadd.xlane.f32.xlu0 %v401
      %v403 = vpop.xlane.xlu0 %402
      %v404 = vsel %vm181, %v159, 0.0
      %405 = vadd.xlane.f32.xlu0 %v404
      %v406 = vpop.xlane.xlu0 %405
      %v407 = vsel %vm181, %v160, 0.0
      %408 = vadd.xlane.f32.xlu0 %v407
      %v409 = vpop.xlane.xlu0 %408
      %v410 = vsel %vm181, %v161, 0.0
      %411 = vadd.xlane.f32.xlu0 %v410
      %v412 = vpop.xlane.xlu0 %411
      %v413 = vsel %vm181, %v162, 0.0
      %414 = vadd.xlane.f32.xlu0 %v413
      %v415 = vpop.xlane.xlu0 %414
      %v416 = vsel %vm181, %v163, 0.0
      %417 = vadd.xlane.f32.xlu0 %v416
      %v418 = vpop.xlane.xlu0 %417
      %v419 = vsel %vm181, %v164, 0.0
      %420 = vadd.xlane.f32.xlu0 %v419
      %v421 = vpop.xlane.xlu0 %420
      %v422 = vlaneseq
      %v423 = vand.u32 %v422, 127
      %424 = vset.pattern.permute.xlu0 0
      %425 = vperm.xlu0 %424, %v165
      %v426 = vpop.permute.xlu0 %425
      %427 = vset.pattern.permute.xlu0 0
      %428 = vperm.xlu0 %427, %v166
      %v429 = vpop.permute.xlu0 %428
      %430 = vset.pattern.permute.xlu0 0
      %431 = vperm.xlu0 %430, %v167
      %v432 = vpop.permute.xlu0 %431
      %433 = vset.pattern.permute.xlu0 0
      %434 = vperm.xlu0 %433, %v168
      %v435 = vpop.permute.xlu0 %434
      %436 = vset.pattern.permute.xlu0 0
      %437 = vperm.xlu0 %436, %v169
      %v438 = vpop.permute.xlu0 %437
      %439 = vset.pattern.permute.xlu0 0
      %440 = vperm.xlu0 %439, %v170
      %v441 = vpop.permute.xlu0 %440
      %442 = vset.pattern.permute.xlu0 0
      %443 = vperm.xlu0 %442, %v171
      %v444 = vpop.permute.xlu0 %443
      %445 = vset.pattern.permute.xlu0 0
      %446 = vperm.xlu0 %445, %v172
      %v447 = vpop.permute.xlu0 %446
      %448 = vset.pattern.permute.xlu0 0
      %449 = vperm.xlu0 %448, %v173
      %v450 = vpop.permute.xlu0 %449
      %451 = vset.pattern.permute.xlu0 0
      %452 = vperm.xlu0 %451, %v174
      %v453 = vpop.permute.xlu0 %452
      %454 = vset.pattern.permute.xlu0 0
      %455 = vperm.xlu0 %454, %v175
      %v456 = vpop.permute.xlu0 %455
      %457 = vset.pattern.permute.xlu0 0
      %458 = vperm.xlu0 %457, %v176
      %v459 = vpop.permute.xlu0 %458
      %460 = vset.pattern.permute.xlu0 0
      %461 = vperm.xlu0 %460, %v177
      %v462 = vpop.permute.xlu0 %461
      %463 = vset.pattern.permute.xlu0 0
      %464 = vperm.xlu0 %463, %v178
      %v465 = vpop.permute.xlu0 %464
      %466 = vset.pattern.permute.xlu0 0
      %467 = vperm.xlu0 %466, %v179
      %v468 = vpop.permute.xlu0 %467
      %469 = vset.pattern.permute.xlu0 0
      %470 = vperm.xlu0 %469, %v180
      %v471 = vpop.permute.xlu0 %470
      %vm472 = vcmp.eq.s32.totalorder %v423, %v426
      %vm473 = vcmp.eq.s32.totalorder %v423, %v429
      %vm474 = vcmp.eq.s32.totalorder %v423, %v432
      %vm475 = vcmp.eq.s32.totalorder %v423, %v435
      %vm476 = vcmp.eq.s32.totalorder %v423, %v438
      %vm477 = vcmp.eq.s32.totalorder %v423, %v441
      %vm478 = vcmp.eq.s32.totalorder %v423, %v444
      %vm479 = vcmp.eq.s32.totalorder %v423, %v447
      %vm480 = vcmp.eq.s32.totalorder %v423, %v450
      %vm481 = vcmp.eq.s32.totalorder %v423, %v453
      %vm482 = vcmp.eq.s32.totalorder %v423, %v456
      %vm483 = vcmp.eq.s32.totalorder %v423, %v459
      %vm484 = vcmp.eq.s32.totalorder %v423, %v462
      %vm485 = vcmp.eq.s32.totalorder %v423, %v465
      %vm486 = vcmp.eq.s32.totalorder %v423, %v468
      %vm487 = vcmp.eq.s32.totalorder %v423, %v471
      %v488 = vsel %vm472, %v149, 0.0
      %v489 = vsel %vm473, %v150, 0.0
      %v490 = vsel %vm474, %v151, 0.0
      %v491 = vsel %vm475, %v152, 0.0
      %v492 = vsel %vm476, %v153, 0.0
      %v493 = vsel %vm477, %v154, 0.0
      %v494 = vsel %vm478, %v155, 0.0
      %v495 = vsel %vm479, %v156, 0.0
      %v496 = vsel %vm480, %v157, 0.0
      %v497 = vsel %vm481, %v158, 0.0
      %v498 = vsel %vm482, %v159, 0.0
      %v499 = vsel %vm483, %v160, 0.0
      %v500 = vsel %vm484, %v161, 0.0
      %v501 = vsel %vm485, %v162, 0.0
      %v502 = vsel %vm486, %v163, 0.0
      %v503 = vsel %vm487, %v164, 0.0
      %v504 = vsel %vm181, %v488, 0.0
      %505 = vadd.xlane.f32.xlu0 %v504
      %v506 = vpop.xlane.xlu0 %505
      %v507 = vsel %vm181, %v489, 0.0
      %508 = vadd.xlane.f32.xlu0 %v507
      %v509 = vpop.xlane.xlu0 %508
      %v510 = vsel %vm181, %v490, 0.0
      %511 = vadd.xlane.f32.xlu0 %v510
      %v512 = vpop.xlane.xlu0 %511
      %v513 = vsel %vm181, %v491, 0.0
      %514 = vadd.xlane.f32.xlu0 %v513
      %v515 = vpop.xlane.xlu0 %514
      %v516 = vsel %vm181, %v492, 0.0
      %517 = vadd.xlane.f32.xlu0 %v516
      %v518 = vpop.xlane.xlu0 %517
      %v519 = vsel %vm181, %v493, 0.0
      %520 = vadd.xlane.f32.xlu0 %v519
      %v521 = vpop.xlane.xlu0 %520
      %v522 = vsel %vm181, %v494, 0.0
      %523 = vadd.xlane.f32.xlu0 %v522
      %v524 = vpop.xlane.xlu0 %523
      %v525 = vsel %vm181, %v495, 0.0
      %526 = vadd.xlane.f32.xlu0 %v525
      %v527 = vpop.xlane.xlu0 %526
      %v528 = vsel %vm181, %v496, 0.0
      %529 = vadd.xlane.f32.xlu0 %v528
      %v530 = vpop.xlane.xlu0 %529
      %v531 = vsel %vm181, %v497, 0.0
      %532 = vadd.xlane.f32.xlu0 %v531
      %v533 = vpop.xlane.xlu0 %532
      %v534 = vsel %vm181, %v498, 0.0
      %535 = vadd.xlane.f32.xlu0 %v534
      %v536 = vpop.xlane.xlu0 %535
      %v537 = vsel %vm181, %v499, 0.0
      %538 = vadd.xlane.f32.xlu0 %v537
      %v539 = vpop.xlane.xlu0 %538
      %v540 = vsel %vm181, %v500, 0.0
      %541 = vadd.xlane.f32.xlu0 %v540
      %v542 = vpop.xlane.xlu0 %541
      %v543 = vsel %vm181, %v501, 0.0
      %544 = vadd.xlane.f32.xlu0 %v543
      %v545 = vpop.xlane.xlu0 %544
      %v546 = vsel %vm181, %v502, 0.0
      %547 = vadd.xlane.f32.xlu0 %v546
      %v548 = vpop.xlane.xlu0 %547
      %v549 = vsel %vm181, %v503, 0.0
      %550 = vadd.xlane.f32.xlu0 %v549
      %v551 = vpop.xlane.xlu0 %550
      %v552 = vsub.f32 %v358, %v506
      %v553 = vsub.f32 %v359, %v509
      %v554 = vsub.f32 %v360, %v512
      %v555 = vsub.f32 %v361, %v515
      %v556 = vsub.f32 %v362, %v518
      %v557 = vsub.f32 %v363, %v521
      %v558 = vsub.f32 %v364, %v524
      %v559 = vsub.f32 %v365, %v527
      %v560 = vsub.f32 %v366, %v530
      %v561 = vsub.f32 %v367, %v533
      %v562 = vsub.f32 %v368, %v536
      %v563 = vsub.f32 %v369, %v539
      %v564 = vsub.f32 %v370, %v542
      %v565 = vsub.f32 %v371, %v545
      %v566 = vsub.f32 %v372, %v548
      %v567 = vsub.f32 %v373, %v551
      %v568 = vmul.f32 %v552, 0.9
      %v569 = vmul.f32 %v553, 0.9
      %v570 = vmul.f32 %v554, 0.9
      %v571 = vmul.f32 %v555, 0.9
      %v572 = vmul.f32 %v556, 0.9
      %v573 = vmul.f32 %v557, 0.9
      %v574 = vmul.f32 %v558, 0.9
      %v575 = vmul.f32 %v559, 0.9
      %v576 = vmul.f32 %v560, 0.9
      %v577 = vmul.f32 %v561, 0.9
      %v578 = vmul.f32 %v562, 0.9
      %v579 = vmul.f32 %v563, 0.9
      %v580 = vmul.f32 %v564, 0.9
      %v581 = vmul.f32 %v565, 0.9
      %v582 = vmul.f32 %v566, 0.9
      %v583 = vmul.f32 %v567, 0.9
      %v584 = vmul.f32 %v358, 32.0
      %v585 = vmul.f32 %v359, 32.0
      %v586 = vmul.f32 %v360, 32.0
      %v587 = vmul.f32 %v361, 32.0
      %v588 = vmul.f32 %v362, 32.0
      %v589 = vmul.f32 %v363, 32.0
      %v590 = vmul.f32 %v364, 32.0
      %v591 = vmul.f32 %v365, 32.0
      %v592 = vmul.f32 %v366, 32.0
      %v593 = vmul.f32 %v367, 32.0
      %v594 = vmul.f32 %v368, 32.0
      %v595 = vmul.f32 %v369, 32.0
      %v596 = vmul.f32 %v370, 32.0
      %v597 = vmul.f32 %v371, 32.0
      %v598 = vmul.f32 %v372, 32.0
      %v599 = vmul.f32 %v373, 32.0
      %v600 = vsub.f32 %v584, %v376
      %v601 = vsub.f32 %v585, %v379
      %v602 = vsub.f32 %v586, %v382
      %v603 = vsub.f32 %v587, %v385
      %v604 = vsub.f32 %v588, %v388
      %v605 = vsub.f32 %v589, %v391
      %v606 = vsub.f32 %v590, %v394
      %v607 = vsub.f32 %v591, %v397
      %v608 = vsub.f32 %v592, %v400
      %v609 = vsub.f32 %v593, %v403
      %v610 = vsub.f32 %v594, %v406
      %v611 = vsub.f32 %v595, %v409
      %v612 = vsub.f32 %v596, %v412
      %v613 = vsub.f32 %v597, %v415
      %v614 = vsub.f32 %v598, %v418
      %v615 = vsub.f32 %v599, %v421
      %v616 = vmul.f32 %v600, 0.003125
      %v617 = vmul.f32 %v601, 0.003125
      %v618 = vmul.f32 %v602, 0.003125
      %v619 = vmul.f32 %v603, 0.003125
      %v620 = vmul.f32 %v604, 0.003125
      %v621 = vmul.f32 %v605, 0.003125
      %v622 = vmul.f32 %v606, 0.003125
      %v623 = vmul.f32 %v607, 0.003125
      %v624 = vmul.f32 %v608, 0.003125
      %v625 = vmul.f32 %v609, 0.003125
      %v626 = vmul.f32 %v610, 0.003125
      %v627 = vmul.f32 %v611, 0.003125
      %v628 = vmul.f32 %v612, 0.003125
      %v629 = vmul.f32 %v613, 0.003125
      %v630 = vmul.f32 %v614, 0.003125
      %v631 = vmul.f32 %v615, 0.003125
      %v632 = vadd.f32 %v568, %v616
      %v633 = vadd.f32 %v569, %v617
      %v634 = vadd.f32 %v570, %v618
      %v635 = vadd.f32 %v571, %v619
      %v636 = vadd.f32 %v572, %v620
      %v637 = vadd.f32 %v573, %v621
      %v638 = vadd.f32 %v574, %v622
      %v639 = vadd.f32 %v575, %v623
      %v640 = vadd.f32 %v576, %v624
      %v641 = vadd.f32 %v577, %v625
      %v642 = vadd.f32 %v578, %v626
      %v643 = vadd.f32 %v579, %v627
      %v644 = vadd.f32 %v580, %v628
      %v645 = vadd.f32 %v581, %v629
      %v646 = vadd.f32 %v582, %v630
      %v647 = vadd.f32 %v583, %v631
      %s648 = smul.u32 %s82, 128
      %v649 = vlaneseq
      %v650 = vshrl.u32 %v649, 7
      %v651 = vadd.s32 %v650, 8
      %v652 = vadd.s32 %v650, 16
      %v653 = vadd.s32 %v650, 24
      %v654 = vadd.s32 %v650, 32
      %v655 = vadd.s32 %v650, 40
      %v656 = vadd.s32 %v650, 48
      %v657 = vadd.s32 %v650, 56
      %v658 = vadd.s32 %v650, 64
      %v659 = vadd.s32 %v650, 72
      %v660 = vadd.s32 %v650, 80
      %v661 = vadd.s32 %v650, 88
      %v662 = vadd.s32 %v650, 96
      %v663 = vadd.s32 %v650, 104
      %v664 = vadd.s32 %v650, 112
      %v665 = vadd.s32 %v650, 120
      %v666 = vstv %s648
      %v667 = vadd.s32 %v666, %v650
      %v668 = vadd.s32 %v666, %v651
      %v669 = vadd.s32 %v666, %v652
      %v670 = vadd.s32 %v666, %v653
      %v671 = vadd.s32 %v666, %v654
      %v672 = vadd.s32 %v666, %v655
      %v673 = vadd.s32 %v666, %v656
      %v674 = vadd.s32 %v666, %v657
      %v675 = vadd.s32 %v666, %v658
      %v676 = vadd.s32 %v666, %v659
      %v677 = vadd.s32 %v666, %v660
      %v678 = vadd.s32 %v666, %v661
      %v679 = vadd.s32 %v666, %v662
      %v680 = vadd.s32 %v666, %v663
      %v681 = vadd.s32 %v666, %v664
      %v682 = vadd.s32 %v666, %v665
      %vm683 = vcmp.lt.s32.totalorder %v667, 128
      %vm684 = vcmp.lt.s32.totalorder %v668, 128
      %vm685 = vcmp.lt.s32.totalorder %v669, 128
      %vm686 = vcmp.lt.s32.totalorder %v670, 128
      %vm687 = vcmp.lt.s32.totalorder %v671, 128
      %vm688 = vcmp.lt.s32.totalorder %v672, 128
      %vm689 = vcmp.lt.s32.totalorder %v673, 128
      %vm690 = vcmp.lt.s32.totalorder %v674, 128
      %vm691 = vcmp.lt.s32.totalorder %v675, 128
      %vm692 = vcmp.lt.s32.totalorder %v676, 128
      %vm693 = vcmp.lt.s32.totalorder %v677, 128
      %vm694 = vcmp.lt.s32.totalorder %v678, 128
      %vm695 = vcmp.lt.s32.totalorder %v679, 128
      %vm696 = vcmp.lt.s32.totalorder %v680, 128
      %vm697 = vcmp.lt.s32.totalorder %v681, 128
      %vm698 = vcmp.lt.s32.totalorder %v682, 128
      %v699 = vsel %vm683, %v632, 0.0
      %v700 = vsel %vm684, %v633, 0.0
      %v701 = vsel %vm685, %v634, 0.0
      %v702 = vsel %vm686, %v635, 0.0
      %v703 = vsel %vm687, %v636, 0.0
      %v704 = vsel %vm688, %v637, 0.0
      %v705 = vsel %vm689, %v638, 0.0
      %v706 = vsel %vm690, %v639, 0.0
      %v707 = vsel %vm691, %v640, 0.0
      %v708 = vsel %vm692, %v641, 0.0
      %v709 = vsel %vm693, %v642, 0.0
      %v710 = vsel %vm694, %v643, 0.0
      %v711 = vsel %vm695, %v644, 0.0
      %v712 = vsel %vm696, %v645, 0.0
      %v713 = vsel %vm697, %v646, 0.0
      %v714 = vsel %vm698, %v647, 0.0
      %v715 = vld [vmem:[#allocation2] sm:$0x1]
      %vm716 = vcmask 7168
      %v717 = vsel %vm716, %v699, 0.0
      %v718 = vsel %vm716, %v700, 0.0
      %v719 = vadd.f32 %v717, %v718
      %v720 = vsel %vm716, %v701, 0.0
      %v721 = vadd.f32 %v719, %v720
      %v722 = vsel %vm716, %v702, 0.0
      %v723 = vadd.f32 %v721, %v722
      %v724 = vsel %vm716, %v703, 0.0
      %v725 = vadd.f32 %v723, %v724
      %v726 = vsel %vm716, %v704, 0.0
      %v727 = vadd.f32 %v725, %v726
      %v728 = vsel %vm716, %v705, 0.0
      %v729 = vadd.f32 %v727, %v728
      %v730 = vsel %vm716, %v706, 0.0
      %v731 = vadd.f32 %v729, %v730
      %v732 = vsel %vm716, %v707, 0.0
      %v733 = vadd.f32 %v731, %v732
      %v734 = vsel %vm716, %v708, 0.0
      %v735 = vadd.f32 %v733, %v734
      %v736 = vsel %vm716, %v709, 0.0
      %v737 = vadd.f32 %v735, %v736
      %v738 = vsel %vm716, %v710, 0.0
      %v739 = vadd.f32 %v737, %v738
      %v740 = vsel %vm716, %v711, 0.0
      %v741 = vadd.f32 %v739, %v740
      %v742 = vsel %vm716, %v712, 0.0
      %v743 = vadd.f32 %v741, %v742
      %v744 = vsel %vm716, %v713, 0.0
      %v745 = vadd.f32 %v743, %v744
      %v746 = vsel %vm716, %v714, 0.0
      %v747 = vadd.f32 %v745, %v746
      %748 = vadd.xlane.f32.xlu0 %v747
      %v749 = vpop.xlane.xlu0 %748
      %v750 = vrot.slane %v749, 4
      %v751 = vadd.f32 %v749, %v750
      %v752 = vrot.slane %v751, 2
      %v753 = vadd.f32 %v751, %v752
      %v754 = vrot.slane %v753, 1
      %v755 = vadd.f32 %v753, %v754
      %s756 = vtos %v755
      %s757 = smul.f32 %s756, 0.0390625
      %v758 = vstv %s757
      %v759 = vadd.f32 %v715, %v758
      %vm760 = vcmask 0
      %761 = vst.msk [vmem:[#allocation2] sm:$0x1] %vm760, %v759
    $region29: #{tpu_custom_call.1} parent=1 // pred_fallthru
      _
    // Predicated region
    $region30: #{tpu_custom_call.1} parent=1 // pred_check
      %p762 = pneg %p83
    $region31: #{tpu_custom_call.1} parent=1 // pred_check_branch
      %764 = sbr.rel (%p762) target = $region33
    $region32: #{tpu_custom_call.1} parent=1 // pred_region
      %v765 = vld [vmem:[#allocation2] sm:$0x1]
      %vm766 = vcmask 0
      %767 = vst.msk [vmem:[#allocation3] sm:$0x1] %vm766, %v765
    $region33: #{tpu_custom_call.1} parent=1 // pred_fallthru
      _
    // Predicated region
    $region34: #{tpu_custom_call.1} parent=1 // pred_check
      _
    $region35: #{tpu_custom_call.1} parent=1 // pred_check_branch
      %769 = sbr.rel (0) target = $region37
    $region36: #{tpu_custom_call.1} parent=1 // pred_region
      %s771 = ssub.s32 16, 16
      %772 = vsyncadd [#allocation4], %s771
      %s774 = sshll.u32 [#allocation3], 4
      %s775 = int_to_ptr.vmem [resolvable:$true] %s774
      %777 = dma.vmem_to_hbm [thread:$0]  %s775, 16, %s4, [#allocation4]
    $region37: #{tpu_custom_call.1} parent=1 // pred_fallthru
      _
    // Predicated region
    $region38: #{tpu_custom_call.1} parent=1 // pred_check
      _
    $region39: #{tpu_custom_call.1} parent=1 // pred_check_branch
      %779 = sbr.rel (0) target = $region41
    $region40: #{tpu_custom_call.1} parent=1 // pred_region
      %780 = dma.done [#allocation4], 16
    $region41: #{tpu_custom_call.1} parent=1 // pred_fallthru
      _
    %781 = vsyncpa [#allocation4], 1

</llo_original>
